<compile_context>
chip_gen: v7x
topology: tpu7x:2x2x1
jax: 0.10.0
libtpu: 0.0.40
codegen_flags: <defaults>
</compile_context>

<pallas_src>
import jax
import jax.numpy as jnp
from jax import lax
from jax.experimental import pallas as pl
from jax.experimental.pallas import tpu as pltpu


def _round_up(x, n):
    return (x + n - 1) // n * n


# Conservative VMEM budget: above the 16/32 MiB scoped defaults, safely under
# v7x's 64 MiB physical VMEM (and trivially under 128 MiB on v5e/v6e).
_VMEM_BUDGET = 40 * 1024 * 1024


def _pick_batch_tile(b, m_pad, p_pad):
    bytes_f32 = 4
    resident = (m_pad * p_pad + p_pad * p_pad) * bytes_f32      # W + A (single-buffered)
    per_row_io = 2 * (m_pad + m_pad + p_pad) * bytes_f32        # double-buffered X, xhat, zhat
    per_row_live = 4 * p_pad * bytes_f32                        # Z, C and temporaries
    avail = max(_VMEM_BUDGET - resident, 8 * (per_row_io + per_row_live))
    tb = avail // (per_row_io + per_row_live)
    tb = max(8, (tb // 8) * 8)          # sublane-aligned
    tb = min(tb, 512)                   # keep per-step tiles reasonable
    tb = min(tb, _round_up(b, 8))
    return int(tb)


def _make_kernel(step, lam, num_layers, twosided, use_bf16):
    step = float(step)
    thr = float(lam) * float(step)
    mxu_dtype = jnp.bfloat16 if use_bf16 else jnp.float32

    def nonlin(z):
        if twosided:
            # relu(|z| - thr) * sign(z)  ==  z - clip(z, -thr, thr)
            return z - jnp.clip(z, -thr, thr)
        return jnp.maximum(z - thr, 0.0)

    def kernel(x_ref, w_ref, a_ref, xhat_ref, zhat_ref):
        X = x_ref[...]        # (TB, m_pad) f32, batch on sublanes, m on lanes
        Wm = w_ref[...]       # (m_pad, p_pad) f32, VMEM-resident
        A = a_ref[...]        # (p_pad, p_pad) f32, VMEM-resident (I - step*W^T W)

        Xc = X.astype(mxu_dtype)
        Wc = Wm.astype(mxu_dtype)
        Ac = A.astype(mxu_dtype)

        tb = X.shape[0]
        p_pad = Wm.shape[1]

        # C = step * X W  (row form of step * W^T x); f32 MXU accumulation.
        C = step * jnp.dot(Xc, Wc, preferred_element_type=jnp.float32)

        def ista_step(z):
            zc = z.astype(mxu_dtype)
            return nonlin(jnp.dot(zc, Ac, preferred_element_type=jnp.float32) + C)

        if num_layers <= 0:
            Z = jnp.zeros((tb, p_pad), jnp.float32)
        else:
            # Z_0 = 0  =>  Z_1 = nonlin(C); skip the all-zero first matmul.
            Z = nonlin(C)
            remaining = num_layers - 1
            if remaining > 0:
                if remaining <= 8:
                    for _ in range(remaining):
                        Z = ista_step(Z)
                else:
                    Z = lax.fori_loop(0, remaining, lambda _, z: ista_step(z),
                                      Z, unroll=2)

        # Decode: xhat = W z  ->  row form Z W^T (contract on p, no transpose).
        xhat_ref[...] = lax.dot_general(
            Z.astype(mxu_dtype), Wc, (((1,), (1,)), ((), ())),
            preferred_element_type=jnp.float32)
        zhat_ref[...] = Z

    return kernel


def ae_forward_pallas(x, W, *, step, lam, num_layers, twosided, use_bf16=False):
    """x: (B, m, 1) torch-style column vectors; W: (m, p) column-normalized."""
    B, m, _ = x.shape
    p = W.shape[1]
    x2d = x.reshape(B, m).astype(jnp.float32)
    W = W.astype(jnp.float32)

    # Lane-dense padding (last dims -> multiples of 128); sublane-aligned batch.
    m_pad = _round_up(m, 128)
    p_pad = _round_up(p, 128)
    tb = _pick_batch_tile(B, m_pad, p_pad)
    b_pad = _round_up(max(B, tb), tb)

    Wp = jnp.pad(W, ((0, m_pad - m), (0, p_pad - p)))
    Xp = jnp.pad(x2d, ((0, b_pad - B), (0, m_pad - m)))

    # A = I - step * W^T W computed ONCE here (hoisted out of the per-tile
    # kernel body) and kept VMEM-resident via a constant index_map.  Padded
    # dictionary columns are all-zero, so padded code entries stay exactly 0.
    A = jnp.eye(p_pad, dtype=jnp.float32) - step * (Wp.T @ Wp)

    kernel = _make_kernel(step, lam, num_layers, twosided, use_bf16)
    grid = (b_pad // tb,)

    xhat_p, zhat_p = pl.pallas_call(
        kernel,
        out_shape=(jax.ShapeDtypeStruct((b_pad, m_pad), jnp.float32),
                   jax.ShapeDtypeStruct((b_pad, p_pad), jnp.float32)),
        grid=grid,
        in_specs=[pl.BlockSpec((tb, m_pad), lambda i: (i, 0)),      # X tile
                  pl.BlockSpec((m_pad, p_pad), lambda i: (0, 0)),   # W resident
                  pl.BlockSpec((p_pad, p_pad), lambda i: (0, 0))],  # A resident
        out_specs=[pl.BlockSpec((tb, m_pad), lambda i: (i, 0)),     # xhat tile
                   pl.BlockSpec((tb, p_pad), lambda i: (i, 0))],    # zhat tile
        compiler_params=pltpu.CompilerParams(
            dimension_semantics=("parallel",),
            vmem_limit_bytes=_VMEM_BUDGET),
    )(Xp, Wp, A)

    xhat = xhat_p[:B, :m].reshape(B, m, 1)
    zhat = zhat_p[:B, :p].reshape(B, p, 1)
    return xhat, zhat


# ---------------- pure-JAX reference (mirror of the PyTorch module) ----------
def ae_forward_ref(x, W, *, step, lam, num_layers, twosided):
    B = x.shape[0]
    p = W.shape[1]
    zhat = jnp.zeros((B, p, 1), jnp.float32)
    IplusWTW = jnp.eye(p, dtype=jnp.float32) - step * (W.T @ W)
    WTx = step * jnp.matmul(W.T, x)

    def nonlin(z):
        if twosided:
            return jnp.maximum(jnp.abs(z) - lam * step, 0.0) * jnp.sign(z)
        return jnp.maximum(z - lam * step, 0.0)

    for _ in range(num_layers):
        zhat = nonlin(jnp.matmul(IplusWTW, zhat) + WTx)
    xhat = jnp.matmul(W, zhat)
    return xhat, zhat


if __name__ == "__main__":
    # module config: m = data dim, p = code dim
    B, m, p = 2, 16, 32
    num_layers = 5
    twosided = True
    lam, step = 0.5, 0.1

    key = jax.random.PRNGKey(0)
    kW, kx = jax.random.split(key)

    # W ~ randn(m, p), columns L2-normalized (F.normalize(W, p=2, dim=0))
    W0 = jax.random.normal(kW, (m, p), jnp.float32)
    W = W0 / jnp.linalg.norm(W0, axis=0, keepdims=True)

    x = jax.random.normal(kx, (B, m, 1), jnp.float32)

    xhat_r, zhat_r = ae_forward_ref(
        x, W, step=step, lam=lam, num_layers=num_layers, twosided=twosided)

    # f32 MXU path: strict check against the reference.
    xhat, zhat = ae_forward_pallas(
        x, W, step=step, lam=lam, num_layers=num_layers, twosided=twosided)
    jax.block_until_ready((xhat, zhat))
    assert xhat.shape == (B, m, 1) and zhat.shape == (B, p, 1)
    assert jnp.allclose(xhat, xhat_r, atol=1e-4, rtol=1e-4), "xhat mismatch"
    assert jnp.allclose(zhat, zhat_r, atol=1e-4, rtol=1e-4), "zhat mismatch"

    # bf16-operand MXU path (f32 accumulation): the fast path at real sizes.
    xhat_bf, zhat_bf = ae_forward_pallas(
        x, W, step=step, lam=lam, num_layers=num_layers, twosided=twosided,
        use_bf16=True)
    jax.block_until_ready((xhat_bf, zhat_bf))
    assert jnp.allclose(xhat_bf, xhat_r, atol=5e-2, rtol=5e-2), "bf16 xhat mismatch"
    assert jnp.allclose(zhat_bf, zhat_r, atol=5e-2, rtol=5e-2), "bf16 zhat mismatch"

    print("KERNEL_OK")
</pallas_src>

<mosaic_0001>
module attributes {stable_mosaic.version = 11 : i64} {
  func.func @kernel(%arg0: i32, %arg1: memref<8x128xf32, #tpu.memory_space<vmem>>, %arg2: memref<128x128xf32, #tpu.memory_space<vmem>>, %arg3: memref<128x128xf32, #tpu.memory_space<vmem>>, %arg4: memref<8x128xf32, #tpu.memory_space<vmem>>, %arg5: memref<8x128xf32, #tpu.memory_space<vmem>>) attributes {dimension_semantics = [#tpu.dimension_semantics<parallel>], iteration_bounds = array<i64: 1>, scalar_prefetch = 0 : i64, scratch_operands = 0 : i64, tpu.core_type = #tpu.core_type<tc>, window_params = [{transform_indices = @transform_0, window_bounds = array<i64: 8, 128>}, {pipeline_mode = #tpu.pipeline_mode<synchronous>, transform_indices = @transform_1, window_bounds = array<i64: 128, 128>}, {pipeline_mode = #tpu.pipeline_mode<synchronous>, transform_indices = @transform_2, window_bounds = array<i64: 128, 128>}, {transform_indices = @transform_3, window_bounds = array<i64: 8, 128>}, {transform_indices = @transform_4, window_bounds = array<i64: 8, 128>}]} {
    %c0 = arith.constant 0 : index
    %c0_0 = arith.constant 0 : index
    %0 = vector.load %arg1[%c0, %c0_0] : memref<8x128xf32, #tpu.memory_space<vmem>>, vector<8x128xf32>
    %c0_1 = arith.constant 0 : index
    %c0_2 = arith.constant 0 : index
    %1 = vector.load %arg2[%c0_1, %c0_2] : memref<128x128xf32, #tpu.memory_space<vmem>>, vector<128x128xf32>
    %c0_3 = arith.constant 0 : index
    %c0_4 = arith.constant 0 : index
    %2 = vector.load %arg3[%c0_3, %c0_4] : memref<128x128xf32, #tpu.memory_space<vmem>>, vector<128x128xf32>
    %cst = arith.constant dense<0.000000e+00> : vector<8x128xf32>
    %3 = tpu.matmul %0, %1, %cst {dimension_numbers = #tpu.dot_dimension_numbers<[1], [0], [0], [1], [0, 0, 1, 1], [], []>} : vector<8x128xf32>, vector<128x128xf32>, vector<8x128xf32> -> vector<8x128xf32>
    %cst_5 = arith.constant 1.000000e-01 : f32
    %4 = vector.broadcast %cst_5 : f32 to vector<8x128xf32>
    %5 = arith.mulf %4, %3 : vector<8x128xf32>
    %cst_6 = arith.constant -5.000000e-02 : f32
    %cst_7 = arith.constant 5.000000e-02 : f32
    %6 = vector.broadcast %cst_6 : f32 to vector<8x128xf32>
    %7 = arith.maximumf %6, %5 : vector<8x128xf32>
    %8 = vector.broadcast %cst_7 : f32 to vector<8x128xf32>
    %9 = arith.minimumf %8, %7 : vector<8x128xf32>
    %10 = arith.subf %5, %9 : vector<8x128xf32>
    %cst_8 = arith.constant dense<0.000000e+00> : vector<8x128xf32>
    %11 = tpu.matmul %10, %2, %cst_8 {dimension_numbers = #tpu.dot_dimension_numbers<[1], [0], [0], [1], [0, 0, 1, 1], [], []>} : vector<8x128xf32>, vector<128x128xf32>, vector<8x128xf32> -> vector<8x128xf32>
    %12 = arith.addf %11, %5 : vector<8x128xf32>
    %cst_9 = arith.constant -5.000000e-02 : f32
    %cst_10 = arith.constant 5.000000e-02 : f32
    %13 = vector.broadcast %cst_9 : f32 to vector<8x128xf32>
    %14 = arith.maximumf %13, %12 : vector<8x128xf32>
    %15 = vector.broadcast %cst_10 : f32 to vector<8x128xf32>
    %16 = arith.minimumf %15, %14 : vector<8x128xf32>
    %17 = arith.subf %12, %16 : vector<8x128xf32>
    %cst_11 = arith.constant dense<0.000000e+00> : vector<8x128xf32>
    %18 = tpu.matmul %17, %2, %cst_11 {dimension_numbers = #tpu.dot_dimension_numbers<[1], [0], [0], [1], [0, 0, 1, 1], [], []>} : vector<8x128xf32>, vector<128x128xf32>, vector<8x128xf32> -> vector<8x128xf32>
    %19 = arith.addf %18, %5 : vector<8x128xf32>
    %cst_12 = arith.constant -5.000000e-02 : f32
    %cst_13 = arith.constant 5.000000e-02 : f32
    %20 = vector.broadcast %cst_12 : f32 to vector<8x128xf32>
    %21 = arith.maximumf %20, %19 : vector<8x128xf32>
    %22 = vector.broadcast %cst_13 : f32 to vector<8x128xf32>
    %23 = arith.minimumf %22, %21 : vector<8x128xf32>
    %24 = arith.subf %19, %23 : vector<8x128xf32>
    %cst_14 = arith.constant dense<0.000000e+00> : vector<8x128xf32>
    %25 = tpu.matmul %24, %2, %cst_14 {dimension_numbers = #tpu.dot_dimension_numbers<[1], [0], [0], [1], [0, 0, 1, 1], [], []>} : vector<8x128xf32>, vector<128x128xf32>, vector<8x128xf32> -> vector<8x128xf32>
    %26 = arith.addf %25, %5 : vector<8x128xf32>
    %cst_15 = arith.constant -5.000000e-02 : f32
    %cst_16 = arith.constant 5.000000e-02 : f32
    %27 = vector.broadcast %cst_15 : f32 to vector<8x128xf32>
    %28 = arith.maximumf %27, %26 : vector<8x128xf32>
    %29 = vector.broadcast %cst_16 : f32 to vector<8x128xf32>
    %30 = arith.minimumf %29, %28 : vector<8x128xf32>
    %31 = arith.subf %26, %30 : vector<8x128xf32>
    %cst_17 = arith.constant dense<0.000000e+00> : vector<8x128xf32>
    %32 = tpu.matmul %31, %2, %cst_17 {dimension_numbers = #tpu.dot_dimension_numbers<[1], [0], [0], [1], [0, 0, 1, 1], [], []>} : vector<8x128xf32>, vector<128x128xf32>, vector<8x128xf32> -> vector<8x128xf32>
    %33 = arith.addf %32, %5 : vector<8x128xf32>
    %cst_18 = arith.constant -5.000000e-02 : f32
    %cst_19 = arith.constant 5.000000e-02 : f32
    %34 = vector.broadcast %cst_18 : f32 to vector<8x128xf32>
    %35 = arith.maximumf %34, %33 : vector<8x128xf32>
    %36 = vector.broadcast %cst_19 : f32 to vector<8x128xf32>
    %37 = arith.minimumf %36, %35 : vector<8x128xf32>
    %38 = arith.subf %33, %37 : vector<8x128xf32>
    %cst_20 = arith.constant dense<0.000000e+00> : vector<8x128xf32>
    %39 = tpu.matmul %38, %1, %cst_20 {dimension_numbers = #tpu.dot_dimension_numbers<[1], [1], [0], [0], [0, 0, 1, 0], [], []>} : vector<8x128xf32>, vector<128x128xf32>, vector<8x128xf32> -> vector<8x128xf32>
    %c0_21 = arith.constant 0 : index
    %c0_22 = arith.constant 0 : index
    %40 = vector.load %arg4[%c0_21, %c0_22] : memref<8x128xf32, #tpu.memory_space<vmem>>, vector<8x128xf32>
    tpu.vector_store %arg4[%c0_21, %c0_22], %39 {strides = array<i32>} : memref<8x128xf32, #tpu.memory_space<vmem>>, vector<8x128xf32>,
    %c0_23 = arith.constant 0 : index
    %c0_24 = arith.constant 0 : index
    %41 = vector.load %arg5[%c0_23, %c0_24] : memref<8x128xf32, #tpu.memory_space<vmem>>, vector<8x128xf32>
    tpu.vector_store %arg5[%c0_23, %c0_24], %38 {strides = array<i32>} : memref<8x128xf32, #tpu.memory_space<vmem>>, vector<8x128xf32>,
    return
  }
  func.func @transform_0(%arg0: i32) -> (i32, i32) {
    %c0_i32 = arith.constant 0 : i32
    %c0_i32_0 = arith.constant 0 : i32
    return %arg0, %c0_i32 : i32, i32
  }
  func.func @transform_1(%arg0: i32) -> (i32, i32) {
    %c0_i32 = arith.constant 0 : i32
    %c0_i32_0 = arith.constant 0 : i32
    %c0_i32_1 = arith.constant 0 : i32
    return %c0_i32, %c0_i32_0 : i32, i32
  }
  func.func @transform_2(%arg0: i32) -> (i32, i32) {
    %c0_i32 = arith.constant 0 : i32
    %c0_i32_0 = arith.constant 0 : i32
    %c0_i32_1 = arith.constant 0 : i32
    return %c0_i32, %c0_i32_0 : i32, i32
  }
  func.func @transform_3(%arg0: i32) -> (i32, i32) {
    %c0_i32 = arith.constant 0 : i32
    %c0_i32_0 = arith.constant 0 : i32
    return %arg0, %c0_i32 : i32, i32
  }
  func.func @transform_4(%arg0: i32) -> (i32, i32) {
    %c0_i32 = arith.constant 0 : i32
    %c0_i32_0 = arith.constant 0 : i32
    return %arg0, %c0_i32 : i32, i32
  }
}

</mosaic_0001>

<llo_original>
// kernel: tpu_custom_call.1
$region0: #{tpu_custom_call.1}
  #allocation0 [shape = 'u32[]', space=smem, size = 0x4, offset = 0x4, fixed_abs, tag = 'smem constant byte address 0x4 - core index']
  #allocation1 [shape = 'u32[144,128]{1,0:T(1,128)}', space=vmem, size = 0x12000, scoped, tag = 'internal scratch']
  %s0 = inlined_call_operand.hbm [shape: f32[8,128], index: 0, kind: input, shape index: {}]
  %s1 = inlined_call_operand.hbm [shape: f32[128,128], index: 1, kind: input, shape index: {}]
  %s2 = inlined_call_operand.hbm [shape: f32[128,128], index: 2, kind: input, shape index: {}]
  %s3 = inlined_call_operand.hbm [shape: f32[8,128], index: 3, kind: output, shape index: {0}]
  %s4 = inlined_call_operand.hbm [shape: f32[8,128], index: 4, kind: output, shape index: {1}]
  %5 = xla_tuple %s3, %s4
  %s6 = sld [smem:[#allocation0]]
  $region42: #{tpu_custom_call.1} parent=0
    _
  %s8 = ssub.s32 1, %s6
  %s9 = scalar_select 0, %s8, %s6
  $region1: #{tpu_custom_call.1} parent=0
    #allocation2 [shape = 'u8[4096]{0}', space=vmem, size = 0x1000, scoped, tag = 'input window, operand 0, single buffered']
    #allocation3 [shape = 's32[1]{0}', space=sflag, size = 0x4, scoped, tag = 'scoped memory for tpu_custom_call.1']
    #allocation4 [shape = 's32[1]{0}', space=sflag, size = 0x4, scoped, tag = 'scoped memory for tpu_custom_call.1']
    #allocation5 [shape = 'u8[65536]{0}', space=vmem, size = 0x10000, scoped, tag = 'input window, operand 1, single buffered']
    #allocation6 [shape = 's32[1]{0}', space=sflag, size = 0x4, scoped, tag = 'scoped memory for tpu_custom_call.1']
    #allocation7 [shape = 'u8[65536]{0}', space=vmem, size = 0x10000, scoped, tag = 'input window, operand 2, single buffered']
    #allocation8 [shape = 'u8[4096]{0}', space=vmem, size = 0x1000, scoped, tag = 'output window, operand 0, single buffered']
    #allocation9 [shape = 'u8[4096]{0}', space=vmem, size = 0x1000, scoped, tag = 'output window, operand 1, single buffered']
    #allocation10 [shape = 's32[1]{0}', space=sflag, size = 0x4, scoped, tag = 'scoped memory for tpu_custom_call.1']
    %10 = vsyncpa [#allocation3], 0
    %11 = vsyncpa [#allocation6], 0
    %12 = vsyncpa [#allocation4], 0
    %13 = vsyncpa [#allocation10], 0
    // Predicated region
    $region2: #{tpu_custom_call.1} parent=1 // pred_check
      _
    $region3: #{tpu_custom_call.1} parent=1 // pred_check_branch
      %15 = sbr.rel (0) target = $region5
    $region4: #{tpu_custom_call.1} parent=1 // pred_region
      %s17 = ssub.s32 128, 128
      %18 = vsyncadd [#allocation3], %s17
      %s20 = sshll.u32 [#allocation2], 4
      %s21 = int_to_ptr.vmem [resolvable:$true] %s20
      %23 = dma.hbm_to_vmem [thread:$0]  %s0, 128, %s21, [#allocation3]
    $region5: #{tpu_custom_call.1} parent=1 // pred_fallthru
      _
    // Predicated region
    $region6: #{tpu_custom_call.1} parent=1 // pred_check
      _
    $region7: #{tpu_custom_call.1} parent=1 // pred_check_branch
      %25 = sbr.rel (0) target = $region9
    $region8: #{tpu_custom_call.1} parent=1 // pred_region
      %s27 = ssub.s32 2048, 2048
      %28 = vsyncadd [#allocation6], %s27
      %s29 = sshll.u32 [#allocation5], 4
      %s30 = int_to_ptr.vmem [resolvable:$true] %s29
      %35 = dma.hbm_to_vmem [thread:$0]  %s1, 2048, %s30, [#allocation6], 128, 128, 8
    $region9: #{tpu_custom_call.1} parent=1 // pred_fallthru
      _
    // Predicated region
    $region10: #{tpu_custom_call.1} parent=1 // pred_check
      _
    $region11: #{tpu_custom_call.1} parent=1 // pred_check_branch
      %37 = sbr.rel (0) target = $region13
    $region12: #{tpu_custom_call.1} parent=1 // pred_region
      %s39 = ssub.s32 2048, 2048
      %40 = vsyncadd [#allocation6], %s39
      %s41 = sshll.u32 [#allocation7], 4
      %s42 = int_to_ptr.vmem [resolvable:$true] %s41
      %47 = dma.hbm_to_vmem [thread:$0]  %s2, 2048, %s42, [#allocation6], 128, 128, 8
    $region13: #{tpu_custom_call.1} parent=1 // pred_fallthru
      _
    // Predicated region
    $region14: #{tpu_custom_call.1} parent=1 // pred_check
      _
    $region15: #{tpu_custom_call.1} parent=1 // pred_check_branch
      %49 = sbr.rel (0) target = $region17
    $region16: #{tpu_custom_call.1} parent=1 // pred_region
      %50 = dma.done [#allocation3], 128
    $region17: #{tpu_custom_call.1} parent=1 // pred_fallthru
      _
    // Predicated region
    $region18: #{tpu_custom_call.1} parent=1 // pred_check
      _
    $region19: #{tpu_custom_call.1} parent=1 // pred_check_branch
      %52 = sbr.rel (0) target = $region21
    $region20: #{tpu_custom_call.1} parent=1 // pred_region
      %53 = dma.done [#allocation6], 2048
    $region21: #{tpu_custom_call.1} parent=1 // pred_fallthru
      _
    // Predicated region
    $region22: #{tpu_custom_call.1} parent=1 // pred_check
      _
    $region23: #{tpu_custom_call.1} parent=1 // pred_check_branch
      %55 = sbr.rel (0) target = $region25
    $region24: #{tpu_custom_call.1} parent=1 // pred_region
      %56 = dma.done [#allocation6], 2048
    $region25: #{tpu_custom_call.1} parent=1 // pred_fallthru
      _
    %v57 = vld [vmem:[#allocation2] sm:$0xff]
    %v58 = vld [vmem:[#allocation5] sm:$0xff]
    %v59 = vld [vmem:[#allocation5 + $0x8] sm:$0xff]
    %v60 = vld [vmem:[#allocation5 + $0x10] sm:$0xff]
    %v61 = vld [vmem:[#allocation5 + $0x18] sm:$0xff]
    %v62 = vld [vmem:[#allocation5 + $0x20] sm:$0xff]
    %v63 = vld [vmem:[#allocation5 + $0x28] sm:$0xff]
    %v64 = vld [vmem:[#allocation5 + $0x30] sm:$0xff]
    %v65 = vld [vmem:[#allocation5 + $0x38] sm:$0xff]
    %v66 = vld [vmem:[#allocation5 + $0x40] sm:$0xff]
    %v67 = vld [vmem:[#allocation5 + $0x48] sm:$0xff]
    %v68 = vld [vmem:[#allocation5 + $0x50] sm:$0xff]
    %v69 = vld [vmem:[#allocation5 + $0x58] sm:$0xff]
    %v70 = vld [vmem:[#allocation5 + $0x60] sm:$0xff]
    %v71 = vld [vmem:[#allocation5 + $0x68] sm:$0xff]
    %v72 = vld [vmem:[#allocation5 + $0x70] sm:$0xff]
    %v73 = vld [vmem:[#allocation5 + $0x78] sm:$0xff]
    %v74 = vld [vmem:[#allocation7] sm:$0xff]
    %v75 = vld [vmem:[#allocation7 + $0x8] sm:$0xff]
    %v76 = vld [vmem:[#allocation7 + $0x10] sm:$0xff]
    %v77 = vld [vmem:[#allocation7 + $0x18] sm:$0xff]
    %v78 = vld [vmem:[#allocation7 + $0x20] sm:$0xff]
    %v79 = vld [vmem:[#allocation7 + $0x28] sm:$0xff]
    %v80 = vld [vmem:[#allocation7 + $0x30] sm:$0xff]
    %v81 = vld [vmem:[#allocation7 + $0x38] sm:$0xff]
    %v82 = vld [vmem:[#allocation7 + $0x40] sm:$0xff]
    %v83 = vld [vmem:[#allocation7 + $0x48] sm:$0xff]
    %v84 = vld [vmem:[#allocation7 + $0x50] sm:$0xff]
    %v85 = vld [vmem:[#allocation7 + $0x58] sm:$0xff]
    %v86 = vld [vmem:[#allocation7 + $0x60] sm:$0xff]
    %v87 = vld [vmem:[#allocation7 + $0x68] sm:$0xff]
    %v88 = vld [vmem:[#allocation7 + $0x70] sm:$0xff]
    %v89 = vld [vmem:[#allocation7 + $0x78] sm:$0xff]
    %90 = vmatprep.subr.mxu0 0.0
    %91 = vmatpush1.msra.mxu0 %v58
    %92 = vmatprep.subr.mxu0 0.0
    %93 = vmatpush1.msra.mxu0 %v59
    %94 = vmatprep.subr.mxu0 0.0
    %95 = vmatpush1.msra.mxu0 %v60
    %96 = vmatprep.subr.mxu0 0.0
    %97 = vmatpush1.msra.mxu0 %v61
    %98 = vmatprep.subr.mxu0 0.0
    %99 = vmatpush1.msra.mxu0 %v62
    %100 = vmatprep.subr.mxu0 0.0
    %101 = vmatpush1.msra.mxu0 %v63
    %102 = vmatprep.subr.mxu0 0.0
    %103 = vmatpush1.msra.mxu0 %v64
    %104 = vmatprep.subr.mxu0 0.0
    %105 = vmatpush1.msra.mxu0 %v65
    %106 = vmatprep.subr.mxu0 0.0
    %107 = vmatpush1.msra.mxu0 %v66
    %108 = vmatprep.subr.mxu0 0.0
    %109 = vmatpush1.msra.mxu0 %v67
    %110 = vmatprep.subr.mxu0 0.0
    %111 = vmatpush1.msra.mxu0 %v68
    %112 = vmatprep.subr.mxu0 0.0
    %113 = vmatpush1.msra.mxu0 %v69
    %114 = vmatprep.subr.mxu0 0.0
    %115 = vmatpush1.msra.mxu0 %v70
    %116 = vmatprep.subr.mxu0 0.0
    %117 = vmatpush1.msra.mxu0 %v71
    %118 = vmatprep.subr.mxu0 0.0
    %119 = vmatpush1.msra.mxu0 %v72
    %120 = vmatprep.subr.mxu0 0.0
    %121 = vmatpush1.msra.mxu0 %v73
    %122 = vmatprep.subr.mxu0 0.0
    %123 = vmatpush1.msra.mxu0 0.0
    %124 = vmatprep.subr.mxu0 0.0
    %125 = vmatpush1.msra.mxu0 0.0
    %126 = vmatprep.subr.mxu0 0.0
    %127 = vmatpush1.msra.mxu0 0.0
    %128 = vmatprep.subr.mxu0 0.0
    %129 = vmatpush1.msra.mxu0 0.0
    %130 = vmatprep.subr.mxu0 0.0
    %131 = vmatpush1.msra.mxu0 0.0
    %132 = vmatprep.subr.mxu0 0.0
    %133 = vmatpush1.msra.mxu0 0.0
    %134 = vmatprep.subr.mxu0 0.0
    %135 = vmatpush1.msra.mxu0 0.0
    %136 = vmatprep.subr.mxu0 0.0
    %137 = vmatpush1.msra.mxu0 0.0
    %138 = vmatprep.subr.mxu0 0.0
    %139 = vmatpush1.msra.mxu0 0.0
    %140 = vmatprep.subr.mxu0 0.0
    %141 = vmatpush1.msra.mxu0 0.0
    %142 = vmatprep.subr.mxu0 0.0
    %143 = vmatpush1.msra.mxu0 0.0
    %144 = vmatprep.subr.mxu0 0.0
    %145 = vmatpush1.msra.mxu0 0.0
    %146 = vmatprep.subr.mxu0 0.0
    %147 = vmatpush1.msra.mxu0 0.0
    %148 = vmatprep.subr.mxu0 0.0
    %149 = vmatpush1.msra.mxu0 0.0
    %150 = vmatprep.subr.mxu0 0.0
    %151 = vmatpush1.msra.mxu0 0.0
    %152 = vmatprep.subr.mxu0 0.0
    %153 = vmatpush1.msra.mxu0 0.0
    %154 = vmatprep.mubr.f32.mxu0 0.0
    %155 = vmatmul.mubr.f32.gmra.mrb[0].mxu0 %v57
    %v156 = vpop.f32.mrb[0].mxu0
    %v157 = vadd.f32 0.0, %v156
    %v158 = vpop.f32.mrb[0].mxu0
    %159 = vdwg.mxu0
    %v160 = vmul.f32 %v157, 0.1
    %v161 = vmax.f32 %v160, -0.05
    %v162 = vmin.f32 %v161, 0.05
    %v163 = vsub.f32 %v160, %v162
    %164 = vmatprep.subr.mxu0 0.0
    %165 = vmatpush1.msra.mxu0 %v74
    %166 = vmatprep.subr.mxu0 0.0
    %167 = vmatpush1.msra.mxu0 %v75
    %168 = vmatprep.subr.mxu0 0.0
    %169 = vmatpush1.msra.mxu0 %v76
    %170 = vmatprep.subr.mxu0 0.0
    %171 = vmatpush1.msra.mxu0 %v77
    %172 = vmatprep.subr.mxu0 0.0
    %173 = vmatpush1.msra.mxu0 %v78
    %174 = vmatprep.subr.mxu0 0.0
    %175 = vmatpush1.msra.mxu0 %v79
    %176 = vmatprep.subr.mxu0 0.0
    %177 = vmatpush1.msra.mxu0 %v80
    %178 = vmatprep.subr.mxu0 0.0
    %179 = vmatpush1.msra.mxu0 %v81
    %180 = vmatprep.subr.mxu0 0.0
    %181 = vmatpush1.msra.mxu0 %v82
    %182 = vmatprep.subr.mxu0 0.0
    %183 = vmatpush1.msra.mxu0 %v83
    %184 = vmatprep.subr.mxu0 0.0
    %185 = vmatpush1.msra.mxu0 %v84
    %186 = vmatprep.subr.mxu0 0.0
    %187 = vmatpush1.msra.mxu0 %v85
    %188 = vmatprep.subr.mxu0 0.0
    %189 = vmatpush1.msra.mxu0 %v86
    %190 = vmatprep.subr.mxu0 0.0
    %191 = vmatpush1.msra.mxu0 %v87
    %192 = vmatprep.subr.mxu0 0.0
    %193 = vmatpush1.msra.mxu0 %v88
    %194 = vmatprep.subr.mxu0 0.0
    %195 = vmatpush1.msra.mxu0 %v89
    %196 = vmatprep.subr.mxu0 0.0
    %197 = vmatpush1.msra.mxu0 0.0
    %198 = vmatprep.subr.mxu0 0.0
    %199 = vmatpush1.msra.mxu0 0.0
    %200 = vmatprep.subr.mxu0 0.0
    %201 = vmatpush1.msra.mxu0 0.0
    %202 = vmatprep.subr.mxu0 0.0
    %203 = vmatpush1.msra.mxu0 0.0
    %204 = vmatprep.subr.mxu0 0.0
    %205 = vmatpush1.msra.mxu0 0.0
    %206 = vmatprep.subr.mxu0 0.0
    %207 = vmatpush1.msra.mxu0 0.0
    %208 = vmatprep.subr.mxu0 0.0
    %209 = vmatpush1.msra.mxu0 0.0
    %210 = vmatprep.subr.mxu0 0.0
    %211 = vmatpush1.msra.mxu0 0.0
    %212 = vmatprep.subr.mxu0 0.0
    %213 = vmatpush1.msra.mxu0 0.0
    %214 = vmatprep.subr.mxu0 0.0
    %215 = vmatpush1.msra.mxu0 0.0
    %216 = vmatprep.subr.mxu0 0.0
    %217 = vmatpush1.msra.mxu0 0.0
    %218 = vmatprep.subr.mxu0 0.0
    %219 = vmatpush1.msra.mxu0 0.0
    %220 = vmatprep.subr.mxu0 0.0
    %221 = vmatpush1.msra.mxu0 0.0
    %222 = vmatprep.subr.mxu0 0.0
    %223 = vmatpush1.msra.mxu0 0.0
    %224 = vmatprep.subr.mxu0 0.0
    %225 = vmatpush1.msra.mxu0 0.0
    %226 = vmatprep.subr.mxu0 0.0
    %227 = vmatpush1.msra.mxu0 0.0
    %228 = vmatprep.mubr.f32.mxu0 0.0
    %229 = vmatmul.mubr.f32.gmra.mrb[0].mxu0 %v163
    %v230 = vpop.f32.mrb[0].mxu0
    %v231 = vadd.f32 %v160, %v230
    %v232 = vpop.f32.mrb[0].mxu0
    %233 = vdwg.mxu0
    %v234 = vmax.f32 %v231, -0.05
    %v235 = vmin.f32 %v234, 0.05
    %v236 = vsub.f32 %v231, %v235
    %237 = vmatprep.subr.mxu0 0.0
    %238 = vmatpush1.msra.mxu0 %v74
    %239 = vmatprep.subr.mxu0 0.0
    %240 = vmatpush1.msra.mxu0 %v75
    %241 = vmatprep.subr.mxu0 0.0
    %242 = vmatpush1.msra.mxu0 %v76
    %243 = vmatprep.subr.mxu0 0.0
    %244 = vmatpush1.msra.mxu0 %v77
    %245 = vmatprep.subr.mxu0 0.0
    %246 = vmatpush1.msra.mxu0 %v78
    %247 = vmatprep.subr.mxu0 0.0
    %248 = vmatpush1.msra.mxu0 %v79
    %249 = vmatprep.subr.mxu0 0.0
    %250 = vmatpush1.msra.mxu0 %v80
    %251 = vmatprep.subr.mxu0 0.0
    %252 = vmatpush1.msra.mxu0 %v81
    %253 = vmatprep.subr.mxu0 0.0
    %254 = vmatpush1.msra.mxu0 %v82
    %255 = vmatprep.subr.mxu0 0.0
    %256 = vmatpush1.msra.mxu0 %v83
    %257 = vmatprep.subr.mxu0 0.0
    %258 = vmatpush1.msra.mxu0 %v84
    %259 = vmatprep.subr.mxu0 0.0
    %260 = vmatpush1.msra.mxu0 %v85
    %261 = vmatprep.subr.mxu0 0.0
    %262 = vmatpush1.msra.mxu0 %v86
    %263 = vmatprep.subr.mxu0 0.0
    %264 = vmatpush1.msra.mxu0 %v87
    %265 = vmatprep.subr.mxu0 0.0
    %266 = vmatpush1.msra.mxu0 %v88
    %267 = vmatprep.subr.mxu0 0.0
    %268 = vmatpush1.msra.mxu0 %v89
    %269 = vmatprep.subr.mxu0 0.0
    %270 = vmatpush1.msra.mxu0 0.0
    %271 = vmatprep.subr.mxu0 0.0
    %272 = vmatpush1.msra.mxu0 0.0
    %273 = vmatprep.subr.mxu0 0.0
    %274 = vmatpush1.msra.mxu0 0.0
    %275 = vmatprep.subr.mxu0 0.0
    %276 = vmatpush1.msra.mxu0 0.0
    %277 = vmatprep.subr.mxu0 0.0
    %278 = vmatpush1.msra.mxu0 0.0
    %279 = vmatprep.subr.mxu0 0.0
    %280 = vmatpush1.msra.mxu0 0.0
    %281 = vmatprep.subr.mxu0 0.0
    %282 = vmatpush1.msra.mxu0 0.0
    %283 = vmatprep.subr.mxu0 0.0
    %284 = vmatpush1.msra.mxu0 0.0
    %285 = vmatprep.subr.mxu0 0.0
    %286 = vmatpush1.msra.mxu0 0.0
    %287 = vmatprep.subr.mxu0 0.0
    %288 = vmatpush1.msra.mxu0 0.0
    %289 = vmatprep.subr.mxu0 0.0
    %290 = vmatpush1.msra.mxu0 0.0
    %291 = vmatprep.subr.mxu0 0.0
    %292 = vmatpush1.msra.mxu0 0.0
    %293 = vmatprep.subr.mxu0 0.0
    %294 = vmatpush1.msra.mxu0 0.0
    %295 = vmatprep.subr.mxu0 0.0
    %296 = vmatpush1.msra.mxu0 0.0
    %297 = vmatprep.subr.mxu0 0.0
    %298 = vmatpush1.msra.mxu0 0.0
    %299 = vmatprep.subr.mxu0 0.0
    %300 = vmatpush1.msra.mxu0 0.0
    %301 = vmatprep.mubr.f32.mxu0 0.0
    %302 = vmatmul.mubr.f32.gmra.mrb[0].mxu0 %v236
    %v303 = vpop.f32.mrb[0].mxu0
    %v304 = vadd.f32 %v160, %v303
    %v305 = vpop.f32.mrb[0].mxu0
    %306 = vdwg.mxu0
    %v307 = vmax.f32 %v304, -0.05
    %v308 = vmin.f32 %v307, 0.05
    %v309 = vsub.f32 %v304, %v308
    %310 = vmatprep.subr.mxu0 0.0
    %311 = vmatpush1.msra.mxu0 %v74
    %312 = vmatprep.subr.mxu0 0.0
    %313 = vmatpush1.msra.mxu0 %v75
    %314 = vmatprep.subr.mxu0 0.0
    %315 = vmatpush1.msra.mxu0 %v76
    %316 = vmatprep.subr.mxu0 0.0
    %317 = vmatpush1.msra.mxu0 %v77
    %318 = vmatprep.subr.mxu0 0.0
    %319 = vmatpush1.msra.mxu0 %v78
    %320 = vmatprep.subr.mxu0 0.0
    %321 = vmatpush1.msra.mxu0 %v79
    %322 = vmatprep.subr.mxu0 0.0
    %323 = vmatpush1.msra.mxu0 %v80
    %324 = vmatprep.subr.mxu0 0.0
    %325 = vmatpush1.msra.mxu0 %v81
    %326 = vmatprep.subr.mxu0 0.0
    %327 = vmatpush1.msra.mxu0 %v82
    %328 = vmatprep.subr.mxu0 0.0
    %329 = vmatpush1.msra.mxu0 %v83
    %330 = vmatprep.subr.mxu0 0.0
    %331 = vmatpush1.msra.mxu0 %v84
    %332 = vmatprep.subr.mxu0 0.0
    %333 = vmatpush1.msra.mxu0 %v85
    %334 = vmatprep.subr.mxu0 0.0
    %335 = vmatpush1.msra.mxu0 %v86
    %336 = vmatprep.subr.mxu0 0.0
    %337 = vmatpush1.msra.mxu0 %v87
    %338 = vmatprep.subr.mxu0 0.0
    %339 = vmatpush1.msra.mxu0 %v88
    %340 = vmatprep.subr.mxu0 0.0
    %341 = vmatpush1.msra.mxu0 %v89
    %342 = vmatprep.subr.mxu0 0.0
    %343 = vmatpush1.msra.mxu0 0.0
    %344 = vmatprep.subr.mxu0 0.0
    %345 = vmatpush1.msra.mxu0 0.0
    %346 = vmatprep.subr.mxu0 0.0
    %347 = vmatpush1.msra.mxu0 0.0
    %348 = vmatprep.subr.mxu0 0.0
    %349 = vmatpush1.msra.mxu0 0.0
    %350 = vmatprep.subr.mxu0 0.0
    %351 = vmatpush1.msra.mxu0 0.0
    %352 = vmatprep.subr.mxu0 0.0
    %353 = vmatpush1.msra.mxu0 0.0
    %354 = vmatprep.subr.mxu0 0.0
    %355 = vmatpush1.msra.mxu0 0.0
    %356 = vmatprep.subr.mxu0 0.0
    %357 = vmatpush1.msra.mxu0 0.0
    %358 = vmatprep.subr.mxu0 0.0
    %359 = vmatpush1.msra.mxu0 0.0
    %360 = vmatprep.subr.mxu0 0.0
    %361 = vmatpush1.msra.mxu0 0.0
    %362 = vmatprep.subr.mxu0 0.0
    %363 = vmatpush1.msra.mxu0 0.0
    %364 = vmatprep.subr.mxu0 0.0
    %365 = vmatpush1.msra.mxu0 0.0
    %366 = vmatprep.subr.mxu0 0.0
    %367 = vmatpush1.msra.mxu0 0.0
    %368 = vmatprep.subr.mxu0 0.0
    %369 = vmatpush1.msra.mxu0 0.0
    %370 = vmatprep.subr.mxu0 0.0
    %371 = vmatpush1.msra.mxu0 0.0
    %372 = vmatprep.subr.mxu0 0.0
    %373 = vmatpush1.msra.mxu0 0.0
    %374 = vmatprep.mubr.f32.mxu0 0.0
    %375 = vmatmul.mubr.f32.gmra.mrb[0].mxu0 %v309
    %v376 = vpop.f32.mrb[0].mxu0
    %v377 = vadd.f32 %v160, %v376
    %v378 = vpop.f32.mrb[0].mxu0
    %379 = vdwg.mxu0
    %v380 = vmax.f32 %v377, -0.05
    %v381 = vmin.f32 %v380, 0.05
    %v382 = vsub.f32 %v377, %v381
    %383 = vmatprep.subr.mxu0 0.0
    %384 = vmatpush1.msra.mxu0 %v74
    %385 = vmatprep.subr.mxu0 0.0
    %386 = vmatpush1.msra.mxu0 %v75
    %387 = vmatprep.subr.mxu0 0.0
    %388 = vmatpush1.msra.mxu0 %v76
    %389 = vmatprep.subr.mxu0 0.0
    %390 = vmatpush1.msra.mxu0 %v77
    %391 = vmatprep.subr.mxu0 0.0
    %392 = vmatpush1.msra.mxu0 %v78
    %393 = vmatprep.subr.mxu0 0.0
    %394 = vmatpush1.msra.mxu0 %v79
    %395 = vmatprep.subr.mxu0 0.0
    %396 = vmatpush1.msra.mxu0 %v80
    %397 = vmatprep.subr.mxu0 0.0
    %398 = vmatpush1.msra.mxu0 %v81
    %399 = vmatprep.subr.mxu0 0.0
    %400 = vmatpush1.msra.mxu0 %v82
    %401 = vmatprep.subr.mxu0 0.0
    %402 = vmatpush1.msra.mxu0 %v83
    %403 = vmatprep.subr.mxu0 0.0
    %404 = vmatpush1.msra.mxu0 %v84
    %405 = vmatprep.subr.mxu0 0.0
    %406 = vmatpush1.msra.mxu0 %v85
    %407 = vmatprep.subr.mxu0 0.0
    %408 = vmatpush1.msra.mxu0 %v86
    %409 = vmatprep.subr.mxu0 0.0
    %410 = vmatpush1.msra.mxu0 %v87
    %411 = vmatprep.subr.mxu0 0.0
    %412 = vmatpush1.msra.mxu0 %v88
    %413 = vmatprep.subr.mxu0 0.0
    %414 = vmatpush1.msra.mxu0 %v89
    %415 = vmatprep.subr.mxu0 0.0
    %416 = vmatpush1.msra.mxu0 0.0
    %417 = vmatprep.subr.mxu0 0.0
    %418 = vmatpush1.msra.mxu0 0.0
    %419 = vmatprep.subr.mxu0 0.0
    %420 = vmatpush1.msra.mxu0 0.0
    %421 = vmatprep.subr.mxu0 0.0
    %422 = vmatpush1.msra.mxu0 0.0
    %423 = vmatprep.subr.mxu0 0.0
    %424 = vmatpush1.msra.mxu0 0.0
    %425 = vmatprep.subr.mxu0 0.0
    %426 = vmatpush1.msra.mxu0 0.0
    %427 = vmatprep.subr.mxu0 0.0
    %428 = vmatpush1.msra.mxu0 0.0
    %429 = vmatprep.subr.mxu0 0.0
    %430 = vmatpush1.msra.mxu0 0.0
    %431 = vmatprep.subr.mxu0 0.0
    %432 = vmatpush1.msra.mxu0 0.0
    %433 = vmatprep.subr.mxu0 0.0
    %434 = vmatpush1.msra.mxu0 0.0
    %435 = vmatprep.subr.mxu0 0.0
    %436 = vmatpush1.msra.mxu0 0.0
    %437 = vmatprep.subr.mxu0 0.0
    %438 = vmatpush1.msra.mxu0 0.0
    %439 = vmatprep.subr.mxu0 0.0
    %440 = vmatpush1.msra.mxu0 0.0
    %441 = vmatprep.subr.mxu0 0.0
    %442 = vmatpush1.msra.mxu0 0.0
    %443 = vmatprep.subr.mxu0 0.0
    %444 = vmatpush1.msra.mxu0 0.0
    %445 = vmatprep.subr.mxu0 0.0
    %446 = vmatpush1.msra.mxu0 0.0
    %447 = vmatprep.mubr.f32.mxu0 0.0
    %448 = vmatmul.mubr.f32.gmra.mrb[0].mxu0 %v382
    %v449 = vpop.f32.mrb[0].mxu0
    %v450 = vadd.f32 %v160, %v449
    %v451 = vpop.f32.mrb[0].mxu0
    %452 = vdwg.mxu0
    %v453 = vmax.f32 %v450, -0.05
    %v454 = vmin.f32 %v453, 0.05
    %v455 = vsub.f32 %v450, %v454
    %456 = vmatprep.subr.mxu0 0.0
    %457 = vmatpush1.xpose.msra.mxu0 %v58
    %458 = vmatprep.subr.mxu0 0.0
    %459 = vmatpush1.xpose.msra.mxu0 %v59
    %460 = vmatprep.subr.mxu0 0.0
    %461 = vmatpush1.xpose.msra.mxu0 %v60
    %462 = vmatprep.subr.mxu0 0.0
    %463 = vmatpush1.xpose.msra.mxu0 %v61
    %464 = vmatprep.subr.mxu0 0.0
    %465 = vmatpush1.xpose.msra.mxu0 %v62
    %466 = vmatprep.subr.mxu0 0.0
    %467 = vmatpush1.xpose.msra.mxu0 %v63
    %468 = vmatprep.subr.mxu0 0.0
    %469 = vmatpush1.xpose.msra.mxu0 %v64
    %470 = vmatprep.subr.mxu0 0.0
    %471 = vmatpush1.xpose.msra.mxu0 %v65
    %472 = vmatprep.subr.mxu0 0.0
    %473 = vmatpush1.xpose.msra.mxu0 %v66
    %474 = vmatprep.subr.mxu0 0.0
    %475 = vmatpush1.xpose.msra.mxu0 %v67
    %476 = vmatprep.subr.mxu0 0.0
    %477 = vmatpush1.xpose.msra.mxu0 %v68
    %478 = vmatprep.subr.mxu0 0.0
    %479 = vmatpush1.xpose.msra.mxu0 %v69
    %480 = vmatprep.subr.mxu0 0.0
    %481 = vmatpush1.xpose.msra.mxu0 %v70
    %482 = vmatprep.subr.mxu0 0.0
    %483 = vmatpush1.xpose.msra.mxu0 %v71
    %484 = vmatprep.subr.mxu0 0.0
    %485 = vmatpush1.xpose.msra.mxu0 %v72
    %486 = vmatprep.subr.mxu0 0.0
    %487 = vmatpush1.xpose.msra.mxu0 %v73
    %488 = vmatprep.subr.mxu0 0.0
    %489 = vmatpush1.xpose.msra.mxu0 0.0
    %490 = vmatprep.subr.mxu0 0.0
    %491 = vmatpush1.xpose.msra.mxu0 0.0
    %492 = vmatprep.subr.mxu0 0.0
    %493 = vmatpush1.xpose.msra.mxu0 0.0
    %494 = vmatprep.subr.mxu0 0.0
    %495 = vmatpush1.xpose.msra.mxu0 0.0
    %496 = vmatprep.subr.mxu0 0.0
    %497 = vmatpush1.xpose.msra.mxu0 0.0
    %498 = vmatprep.subr.mxu0 0.0
    %499 = vmatpush1.xpose.msra.mxu0 0.0
    %500 = vmatprep.subr.mxu0 0.0
    %501 = vmatpush1.xpose.msra.mxu0 0.0
    %502 = vmatprep.subr.mxu0 0.0
    %503 = vmatpush1.xpose.msra.mxu0 0.0
    %504 = vmatprep.subr.mxu0 0.0
    %505 = vmatpush1.xpose.msra.mxu0 0.0
    %506 = vmatprep.subr.mxu0 0.0
    %507 = vmatpush1.xpose.msra.mxu0 0.0
    %508 = vmatprep.subr.mxu0 0.0
    %509 = vmatpush1.xpose.msra.mxu0 0.0
    %510 = vmatprep.subr.mxu0 0.0
    %511 = vmatpush1.xpose.msra.mxu0 0.0
    %512 = vmatprep.subr.mxu0 0.0
    %513 = vmatpush1.xpose.msra.mxu0 0.0
    %514 = vmatprep.subr.mxu0 0.0
    %515 = vmatpush1.xpose.msra.mxu0 0.0
    %516 = vmatprep.subr.mxu0 0.0
    %517 = vmatpush1.xpose.msra.mxu0 0.0
    %518 = vmatprep.subr.mxu0 0.0
    %519 = vmatpush1.xpose.msra.mxu0 0.0
    %520 = vmatprep.mubr.f32.mxu0 0.0
    %521 = vmatmul.mubr.f32.gmra.mrb[0].mxu0 %v455
    %v522 = vpop.f32.mrb[0].mxu0
    %v523 = vadd.f32 0.0, %v522
    %v524 = vpop.f32.mrb[0].mxu0
    %525 = vdwg.mxu0
    %526 = vst [vmem:[#allocation8] sm:$0xff] %v523
    %527 = vst [vmem:[#allocation9] sm:$0xff] %v455
    // Predicated region
    $region26: #{tpu_custom_call.1} parent=1 // pred_check
      _
    $region27: #{tpu_custom_call.1} parent=1 // pred_check_branch
      %529 = sbr.rel (0) target = $region29
    $region28: #{tpu_custom_call.1} parent=1 // pred_region
      %s531 = ssub.s32 128, 128
      %532 = vsyncadd [#allocation4], %s531
      %s534 = sshll.u32 [#allocation8], 4
      %s535 = int_to_ptr.vmem [resolvable:$true] %s534
      %537 = dma.vmem_to_hbm [thread:$0]  %s535, 128, %s3, [#allocation4]
    $region29: #{tpu_custom_call.1} parent=1 // pred_fallthru
      _
    // Predicated region
    $region30: #{tpu_custom_call.1} parent=1 // pred_check
      _
    $region31: #{tpu_custom_call.1} parent=1 // pred_check_branch
      %539 = sbr.rel (0) target = $region33
    $region32: #{tpu_custom_call.1} parent=1 // pred_region
      %s541 = ssub.s32 128, 128
      %542 = vsyncadd [#allocation10], %s541
      %s544 = sshll.u32 [#allocation9], 4
      %s545 = int_to_ptr.vmem [resolvable:$true] %s544
      %547 = dma.vmem_to_hbm [thread:$0]  %s545, 128, %s4, [#allocation10]
    $region33: #{tpu_custom_call.1} parent=1 // pred_fallthru
      _
    // Predicated region
    $region34: #{tpu_custom_call.1} parent=1 // pred_check
      _
    $region35: #{tpu_custom_call.1} parent=1 // pred_check_branch
      %549 = sbr.rel (0) target = $region37
    $region36: #{tpu_custom_call.1} parent=1 // pred_region
      %550 = dma.done [#allocation4], 128
    $region37: #{tpu_custom_call.1} parent=1 // pred_fallthru
      _
    // Predicated region
    $region38: #{tpu_custom_call.1} parent=1 // pred_check
      _
    $region39: #{tpu_custom_call.1} parent=1 // pred_check_branch
      %552 = sbr.rel (0) target = $region41
    $region40: #{tpu_custom_call.1} parent=1 // pred_region
      %553 = dma.done [#allocation10], 128
    $region41: #{tpu_custom_call.1} parent=1 // pred_fallthru
      _
    %554 = vsyncpa [#allocation3], 1
    %555 = vsyncpa [#allocation6], 1
    %556 = vsyncpa [#allocation4], 1
    %557 = vsyncpa [#allocation10], 1

</llo_original>
